<compile_context>
chip_gen: v7x
topology: tpu7x:2x2x1
jax: 0.10.0
libtpu: 0.0.40
codegen_flags: <defaults>
</compile_context>

<pallas_src>
import math

import numpy as np
import jax
import jax.numpy as jnp
from jax.experimental import pallas as pl
from jax.experimental.pallas import tpu as pltpu


def build_spherical_embedding_params(theta_degree, phi_degree, L, logscale=True):
    """Mirrors SphericalEmbedding.__init__ (deterministic, no checkpoint).

    Returns:
      fm_ext4: (4, c_pad) f32 — fourier mapping with (pi * freq_l) folded in,
               4th row is the sin/cos phase bias, columns laid out in torch
               output order and zero-padded to a multiple of 128.
      fm_raw:  (3, M) f32 — original fourier mapping (for the reference).
      freqs:   list of python floats — frequency bands (for the reference).
      out_channels: int — unpadded output width (torch module's value).
      c_pad:   int — padded output width (multiple of 128).
    """
    theta = np.arange(0, 180, theta_degree, dtype=np.float64) * np.pi / 180.0
    phi = np.arange(phi_degree, 180, phi_degree, dtype=np.float64) * np.pi / 180.0
    encoding_length = int(np.floor(L))
    theta_num = len(theta)
    phi_num = len(phi)
    M = theta_num * phi_num + 1
    out_channels = M * 2 * encoding_length

    if logscale:
        freq_bands = 2.0 ** np.linspace(0.0, L - 1.0, encoding_length)
    else:
        freq_bands = np.linspace(1.0, 2.0 ** (L - 1.0), encoding_length)
    freqs = [float(f) for f in freq_bands]

    x = np.sin(phi)[:, None] * np.cos(theta)[None, :]         # (phi_num, theta_num)
    y = np.sin(phi)[:, None] * np.sin(theta)[None, :]         # (phi_num, theta_num)
    z = np.repeat(np.cos(phi)[:, None], theta_num, axis=1)    # (phi_num, theta_num)
    fm = np.stack((z, x, y), axis=-1).reshape(-1, 3).T        # (3, M-1)
    fm = np.concatenate([fm, np.array([[1.0], [0.0], [0.0]])], axis=1)  # (3, M)

    c_pad = ((out_channels + 127) // 128) * 128

    # Expanded mapping with the phase appended as a bias row:
    #   out = sin(node4 @ fm_ext4),  node4 = [x, y, z, 1]
    # For each frequency l:
    #   columns [l*2M      , l*2M +  M) -> sin(f_l*pi*proj)  (phase row = 0)
    #   columns [l*2M +  M , l*2M + 2M) -> cos(f_l*pi*proj)  (phase row = pi/2)
    fm_ext4 = np.zeros((4, c_pad), dtype=np.float64)
    for l, f in enumerate(freqs):
        base = l * 2 * M
        scaled = fm * (f * np.pi)
        fm_ext4[:3, base:base + M] = scaled
        fm_ext4[:3, base + M:base + 2 * M] = scaled
        fm_ext4[3, base + M:base + 2 * M] = np.pi / 2.0
    # padded columns stay all-zero -> sin(0) = 0, sliced off by the wrapper.

    return (jnp.asarray(fm_ext4, dtype=jnp.float32),
            jnp.asarray(fm, dtype=jnp.float32),
            freqs, out_channels, c_pad)


def _spherical_kernel(node_ref, fm_ref, out_ref):
    # node_ref: (tm, 4), fm_ref: (4, tc), out_ref: (tm, tc)
    a = jnp.dot(node_ref[...], fm_ref[...], preferred_element_type=jnp.float32)
    out_ref[...] = jnp.sin(a).astype(out_ref.dtype)


def _pick_col_tile(c_pad, max_lanes=1024):
    """Largest multiple of 128 <= max_lanes that evenly divides c_pad."""
    k = c_pad // 128
    for d in range(min(max_lanes // 128, k), 0, -1):
        if k % d == 0:
            return 128 * d
    return 128


def _vmem_budget_bytes():
    """~70% of physical VMEM (v5e/v6e: ~90 MiB, v7x: ~45 MiB)."""
    try:
        vmem_bytes = int(pltpu.get_tpu_info().vmem_capacity_bytes)
    except Exception:
        vmem_bytes = 64 << 20   # conservative fallback (covers v7x's 64 MiB)
    return int(vmem_bytes * 0.7)


def spherical_embedding(node, fm_ext4, out_channels, *, tile_rows=1024,
                        out_dtype=jnp.float32, keep_padded=False):
    """node: (..., 3) float -> (..., out_channels) out_dtype.

    Set out_dtype=jnp.bfloat16 (and/or keep_padded=True) when downstream
    tolerates it: halves the store traffic (big win on v5e) and avoids the
    un-pad slice copy.
    """
    orig_shape = node.shape
    assert orig_shape[-1] == 3
    n = int(np.prod(orig_shape[:-1])) if len(orig_shape) > 1 else 1
    node_flat = node.reshape(n, 3).astype(jnp.float32)
    # Fold the sin/cos phase into the matmul as a bias: constant 1.0 column.
    node4 = jnp.concatenate(
        [node_flat, jnp.ones((n, 1), dtype=jnp.float32)], axis=-1)

    c_pad = fm_ext4.shape[1]
    out_itemsize = jnp.dtype(out_dtype).itemsize

    # Column tile: lane-dense, divides padded width exactly.
    tc = _pick_col_tile(c_pad)

    # Row tile from the VMEM budget.  Dominant cost is the double-buffered
    # output block: 2 * tm * tc * itemsize; node blocks add 2 * tm * 16 B.
    budget = _vmem_budget_bytes()
    bytes_per_row = 2 * (tc * out_itemsize + 4 * 4)
    tm = (budget // bytes_per_row) // 8 * 8
    tm = max(8, min(int(tile_rows), tm))
    tm = min(tm, pl.cdiv(n, 8) * 8)            # don't exceed the problem size

    # Give v7x's two TensorCores at least 2 parallel grid steps when possible.
    if (c_pad // tc) * pl.cdiv(n, tm) < 2 and n > 8:
        tm = max(8, pl.cdiv(pl.cdiv(n, 2), 8) * 8)

    grid = (pl.cdiv(n, tm), c_pad // tc)       # ragged last row block is fine

    cost = pl.CostEstimate(
        flops=2 * n * 4 * c_pad,
        transcendentals=n * c_pad,
        bytes_accessed=n * c_pad * out_itemsize + n * 16 + 4 * c_pad * 4)

    out = pl.pallas_call(
        _spherical_kernel,
        out_shape=jax.ShapeDtypeStruct((n, c_pad), out_dtype),
        grid=grid,
        in_specs=[
            pl.BlockSpec((tm, 4), lambda i, j: (i, 0)),
            pl.BlockSpec((4, tc), lambda i, j: (0, j)),
        ],
        out_specs=pl.BlockSpec((tm, tc), lambda i, j: (i, j)),
        compiler_params=pltpu.CompilerParams(
            dimension_semantics=("parallel", "parallel"),
            vmem_limit_bytes=budget),
        cost_estimate=cost,
    )(node4, fm_ext4)

    if keep_padded or c_pad == out_channels:
        c_out = c_pad
    else:
        # Extra full-output copy; prefer keep_padded=True when the consumer
        # can take the padded width.
        out = out[:, :out_channels]
        c_out = out_channels
    return out.reshape(*orig_shape[:-1], c_out)


def spherical_embedding_ref(node, fm_raw, freqs):
    """Pure-JAX reference matching the torch forward exactly."""
    proj = jnp.matmul(node.astype(jnp.float32), fm_raw)
    outs = []
    for f in freqs:
        a = f * math.pi * proj
        outs.append(jnp.sin(a))
        outs.append(jnp.cos(a))
    return jnp.concatenate(outs, axis=-1)


if __name__ == "__main__":
    # Small deterministic config: theta step 45deg (4 dirs), phi step 45deg
    # (3 dirs), L = 4 -> out_channels = (4*3 + 1) * 2 * 4 = 104 (padded to 128).
    theta_degree, phi_degree, L = 45.0, 45.0, 4.0
    fm_ext4, fm_raw, freqs, out_channels, c_pad = build_spherical_embedding_params(
        theta_degree, phi_degree, L, logscale=True)

    key = jax.random.PRNGKey(0)
    node = jax.random.normal(key, (2, 64, 3), dtype=jnp.float32)  # (batch, points, 3)

    out = spherical_embedding(node, fm_ext4, out_channels)
    out = jax.block_until_ready(out)

    assert out.shape == (2, 64, out_channels), out.shape

    ref = spherical_embedding_ref(node, fm_raw, freqs)
    np.testing.assert_allclose(np.asarray(out), np.asarray(ref),
                               atol=2e-4, rtol=2e-4)

    print("KERNEL_OK")
</pallas_src>

<mosaic_0001>
module attributes {stable_mosaic.version = 11 : i64} {
  func.func @_spherical_kernel(%arg0: i32, %arg1: i32, %arg2: memref<64x4xf32, #tpu.memory_space<vmem>>, %arg3: memref<4x128xf32, #tpu.memory_space<vmem>>, %arg4: memref<64x128xf32, #tpu.memory_space<vmem>>) attributes {dimension_semantics = [#tpu.dimension_semantics<parallel>, #tpu.dimension_semantics<parallel>], iteration_bounds = array<i64: 2, 1>, scalar_prefetch = 0 : i64, scratch_operands = 0 : i64, tpu.core_type = #tpu.core_type<tc>, window_params = [{transform_indices = @transform_0, window_bounds = array<i64: 64, 4>}, {transform_indices = @transform_1, window_bounds = array<i64: 4, 128>}, {transform_indices = @transform_2, window_bounds = array<i64: 64, 128>}]} {
    %c0 = arith.constant 0 : index
    %c0_0 = arith.constant 0 : index
    %0 = vector.load %arg2[%c0, %c0_0] : memref<64x4xf32, #tpu.memory_space<vmem>>, vector<64x4xf32>
    %c0_1 = arith.constant 0 : index
    %c0_2 = arith.constant 0 : index
    %1 = vector.load %arg3[%c0_1, %c0_2] : memref<4x128xf32, #tpu.memory_space<vmem>>, vector<4x128xf32>
    %cst = arith.constant dense<0.000000e+00> : vector<64x128xf32>
    %2 = tpu.matmul %0, %1, %cst {dimension_numbers = #tpu.dot_dimension_numbers<[1], [0], [0], [1], [0, 0, 1, 1], [], []>} : vector<64x4xf32>, vector<4x128xf32>, vector<64x128xf32> -> vector<64x128xf32>
    %3 = math.sin %2 : vector<64x128xf32>
    %c0_3 = arith.constant 0 : index
    %c0_4 = arith.constant 0 : index
    %4 = vector.load %arg4[%c0_3, %c0_4] : memref<64x128xf32, #tpu.memory_space<vmem>>, vector<64x128xf32>
    tpu.vector_store %arg4[%c0_3, %c0_4], %3 {strides = array<i32>} : memref<64x128xf32, #tpu.memory_space<vmem>>, vector<64x128xf32>,
    return
  }
  func.func @transform_0(%arg0: i32, %arg1: i32) -> (i32, i32) {
    %c0_i32 = arith.constant 0 : i32
    %c0_i32_0 = arith.constant 0 : i32
    return %arg0, %c0_i32 : i32, i32
  }
  func.func @transform_1(%arg0: i32, %arg1: i32) -> (i32, i32) {
    %c0_i32 = arith.constant 0 : i32
    %c0_i32_0 = arith.constant 0 : i32
    return %c0_i32, %arg1 : i32, i32
  }
  func.func @transform_2(%arg0: i32, %arg1: i32) -> (i32, i32) {
    %c0_i32 = arith.constant 0 : i32
    return %arg0, %arg1 : i32, i32
  }
}

</mosaic_0001>

<llo_original>
// kernel: tpu_custom_call.1
$region0: #{tpu_custom_call.1}
  #allocation0 [shape = 'u32[]', space=smem, size = 0x4, offset = 0x4, fixed_abs, tag = 'smem constant byte address 0x4 - core index']
  #allocation1 [shape = 'u32[144,128]{1,0:T(1,128)}', space=vmem, size = 0x12000, scoped, tag = 'internal scratch']
  %s0 = inlined_call_operand.vmem [shape: f32[128,4], index: 0, kind: input, shape index: {}]
  %s1 = inlined_call_operand.vmem [shape: f32[4,128], index: 1, kind: input, shape index: {}]
  %s2 = inlined_call_operand.hbm [shape: f32[128,128], index: 2, kind: output, shape index: {}]
  %s3 = sld [smem:[#allocation0]]
  $region41: #{tpu_custom_call.1} parent=0
    _
  %s5 = ssub.s32 1, %s3
  %s6 = scalar_select 0, %s5, %s3
  $region1: #{tpu_custom_call.1} parent=0
    #allocation2 [shape = 'u8[65536]{0}', space=vmem, size = 0x10000, scoped, tag = 'output window, operand 0']
    #allocation3 [shape = 's32[2]{0}', space=sflag, size = 0x8, scoped, tag = 'scoped memory for tpu_custom_call.1']
    %7 = vsyncpa [#allocation3], 0
    %s8 = scalar_lea.sflag [#allocation3], 1
    %9 = vsyncpa %s8, 0
    loop: start=0, step=1, limit=4
    $region2: #{tpu_custom_call.1} parent=1 // loop_pre_header
      _
    $region3: #{tpu_custom_call.1} parent=1 // loop_header
      %s11 = sphi 0, %s15
      %p12 = scmp.ge.s32.totalorder %s11, 4
      %s18 = sphi 0, %s30
      %s19 = sphi 0, %s26
      %s20 = sphi 0, %s18
      %s21 = sphi 0, %s19
      %s22 = sphi 0, %s20
      %s23 = sphi 0, %s21
      %s33 = sphi 0, %s35
      %s36 = sphi 0, %s33
      %s37 = sphi 0, %s36
      %s53 = sphi 0, %s37
      %s59 = sphi 0, %s61
      %s62 = sphi 0, %s59
      %s63 = sphi 0, %s62
      %s79 = sphi 0, %s63
      %s87 = sphi 0, %s89
      %s90 = sphi 0, %s87
      %s91 = sphi 0, %s90
      %s107 = sphi 0, %s91
    $region4: #{tpu_custom_call.1} parent=1 // loop_header_branch
      %14 = sbr.rel (%p12) target = $region8
    $region5: #{tpu_custom_call.1} parent=1 // loop_body
      %s16 = ssub.s32 %s11, 1
      %s17 = ssub.s32 %s11, 2
      %s24 = sadd.s32 1, %s19
      %p25 = scmp.ge.s32.totalorder %s24, 1
      %s26 = scalar_select %p25, 0, %s24
      %s27 = sadd.s32 1, %s18
      %s28 = scalar_select %p25, %s27, %s18
      %p29 = scmp.ge.s32.totalorder %s28, 2
      %s30 = scalar_select %p29, 0, %s28
      %s31 = ssub.s32 %s18, %s30
      %p32 = scmp.eq.s32.totalorder %s31, 0
      %s34 = sadd.s32 %s33, 1
      %s35 = scalar_select %p32, %s33, %s34
      %p38 = pneg %p32
      %p39 = scmp.eq.s32.totalorder %s11, 1
      %p40 = por %p38, %p39
      %p41 = scmp.ne.s32.totalorder %s33, %s36
      %p42 = scmp.eq.s32.totalorder %s11, 0
      %p43 = por %p41, %p42
      %p44 = scmp.ne.s32.totalorder %s33, %s36
      %p45 = scmp.eq.s32.totalorder %s16, 1
      %p46 = por %p44, %p45
      %p47 = scmp.ne.s32.totalorder %s36, %s37
      %p48 = scmp.eq.s32.totalorder %s16, 0
      %p49 = por %p47, %p48
      %p50 = scmp.ne.s32.totalorder %s36, %s37
      %p51 = scmp.eq.s32.totalorder %s17, 1
      %p52 = por %p50, %p51
      %p54 = scmp.ne.s32.totalorder %s37, %s53
      %p55 = scmp.eq.s32.totalorder %s17, 0
      %p56 = por %p54, %p55
      %s57 = ssub.s32 %s19, %s26
      %p58 = scmp.eq.s32.totalorder %s57, 0
      %s60 = sadd.s32 %s59, 1
      %s61 = scalar_select %p58, %s59, %s60
      %p64 = pneg %p58
      %p65 = scmp.eq.s32.totalorder %s11, 1
      %p66 = por %p64, %p65
      %p67 = scmp.ne.s32.totalorder %s59, %s62
      %p68 = scmp.eq.s32.totalorder %s11, 0
      %p69 = por %p67, %p68
      %p70 = scmp.ne.s32.totalorder %s59, %s62
      %p71 = scmp.eq.s32.totalorder %s16, 1
      %p72 = por %p70, %p71
      %p73 = scmp.ne.s32.totalorder %s62, %s63
      %p74 = scmp.eq.s32.totalorder %s16, 0
      %p75 = por %p73, %p74
      %p76 = scmp.ne.s32.totalorder %s62, %s63
      %p77 = scmp.eq.s32.totalorder %s17, 1
      %p78 = por %p76, %p77
      %p80 = scmp.ne.s32.totalorder %s63, %s79
      %p81 = scmp.eq.s32.totalorder %s17, 0
      %p82 = por %p80, %p81
      %s83 = ssub.s32 %s18, %s30
      %s84 = ssub.s32 %s19, %s26
      %s85 = sor.u32 %s83, %s84
      %p86 = scmp.eq.s32.totalorder %s85, 0
      %s88 = sadd.s32 %s87, 1
      %s89 = scalar_select %p86, %s87, %s88
      %p92 = pneg %p86
      %p93 = scmp.eq.s32.totalorder %s11, 1
      %p94 = por %p92, %p93
      %p95 = scmp.ne.s32.totalorder %s87, %s90
      %p96 = scmp.eq.s32.totalorder %s11, 0
      %p97 = por %p95, %p96
      %p98 = scmp.ne.s32.totalorder %s87, %s90
      %p99 = scmp.eq.s32.totalorder %s16, 1
      %p100 = por %p98, %p99
      %p101 = scmp.ne.s32.totalorder %s90, %s91
      %p102 = scmp.eq.s32.totalorder %s16, 0
      %p103 = por %p101, %p102
      %p104 = scmp.ne.s32.totalorder %s90, %s91
      %p105 = scmp.eq.s32.totalorder %s17, 1
      %p106 = por %p104, %p105
      %p108 = scmp.ne.s32.totalorder %s91, %s107
      %p109 = scmp.eq.s32.totalorder %s17, 0
      %p110 = por %p108, %p109
      %p111 = scmp.le.s32.totalorder 1, %s11
      %p112 = scmp.lt.s32.totalorder %s11, 3
      %p113 = pnand %p111, %p112
      %p114 = pneg %p113
      // Predicated region
      $region9: #{tpu_custom_call.1} parent=5 // pred_check
        _
      $region10: #{tpu_custom_call.1} parent=5 // pred_check_branch
        %116 = sbr.rel (%p113) target = $region12
      $region11: #{tpu_custom_call.1} parent=5 // pred_region
        %s117 = ssub.s32 %s11, 1
        // Predicated region
        $region13: #{tpu_custom_call.1} parent=11 // pred_check
          %p118 = pneg %p75
        $region14: #{tpu_custom_call.1} parent=11 // pred_check_branch
          %120 = sbr.rel (%p118) target = $region16
        $region15: #{tpu_custom_call.1} parent=11 // pred_region
          %p121 = scmp.lt.s32.totalorder %s21, 0
          %s122 = scalar_select %p121, %s21, 0
          %s123 = smul.addr %s122, 4
          %s124 = scalar_lea.vmem %s1, %s123
        $region16: #{tpu_custom_call.1} parent=11 // pred_fallthru
          _
      $region12: #{tpu_custom_call.1} parent=5 // pred_fallthru
        _
      %p125 = scmp.lt.s32.totalorder %s11, 2
      // Predicated region
      $region17: #{tpu_custom_call.1} parent=5 // pred_check
        %p126 = pneg %p125
      $region18: #{tpu_custom_call.1} parent=5 // pred_check_branch
        %128 = sbr.rel (%p126) target = $region20
      $region19: #{tpu_custom_call.1} parent=5 // pred_region
        // Predicated region
        $region21: #{tpu_custom_call.1} parent=19 // pred_check
          %p129 = pneg %p43
        $region22: #{tpu_custom_call.1} parent=19 // pred_check_branch
          %131 = sbr.rel (%p129) target = $region24
        $region23: #{tpu_custom_call.1} parent=19 // pred_region
          %s132 = smul.u32 8, %s18
          %p133 = scmp.lt.s32.totalorder %s132, 15
          %s134 = scalar_select %p133, %s132, 15
          %s135 = smul.addr %s134, 8
          %s136 = scalar_lea.vmem %s0, %s135
          %s137 = smul.u32 8, %s18
        $region24: #{tpu_custom_call.1} parent=19 // pred_fallthru
          _
      $region20: #{tpu_custom_call.1} parent=5 // pred_fallthru
        _
      %p138 = scmp.le.s32.totalorder 1, %s11
      %p139 = scmp.lt.s32.totalorder %s11, 3
      %p140 = pnand %p138, %p139
      %p141 = pneg %p140
      // Predicated region
      $region25: #{tpu_custom_call.1} parent=5 // pred_check
        _
      $region26: #{tpu_custom_call.1} parent=5 // pred_check_branch
        %143 = sbr.rel (%p140) target = $region28
      $region27: #{tpu_custom_call.1} parent=5 // pred_region
        %s144 = ssub.s32 %s11, 1
        %s145 = smul.u32 8, %s20
        %p146 = scmp.lt.s32.totalorder %s145, 15
        %s147 = scalar_select %p146, %s145, 15
        %s148 = smul.addr %s147, 8
        %s149 = scalar_lea.vmem %s0, %s148
        %p150 = pneg %p49
        %p151 = pneg %p46
        %p152 = scmp.lt.s32.totalorder %s21, 0
        %s153 = scalar_select %p152, %s21, 0
        %s154 = smul.addr %s153, 4
        %s155 = scalar_lea.vmem %s1, %s154
        %p156 = pneg %p75
        %p157 = pneg %p72
        %p158 = pneg %p103
        %p159 = pneg %p100
        %s160 = sand.u32 %s90, 1
        %s161 = scalar_lea.sflag [#allocation3], %s160
        %s162 = sand.u32 %s90, 1
        %s163 = smul.addr %s162, 64
        %s164 = scalar_lea.vmem [#allocation2], %s163
        %s165 = smul.u32 8, %s20
        %p166 = scmp.lt.s32.totalorder %s165, 15
        %s167 = scalar_select %p166, %s165, 15
        %s168 = smul.addr %s167, 8
        %s169 = scalar_lea.vmem %s0, %s168
        %s170 = smul.u32 8, %s20
        %p171 = scmp.lt.s32.totalorder %s21, 0
        %s172 = scalar_select %p171, %s21, 0
        %s173 = smul.addr %s172, 4
        %s174 = scalar_lea.vmem %s1, %s173
        %s175 = smul.u32 8, %s20
        %v176 = vld [vmem:[%s169] sm:$0xff]
        %v177 = vld [vmem:[%s169 + $0x8] sm:$0xff]
        %v178 = vld [vmem:[%s169 + $0x10] sm:$0xff]
        %v179 = vld [vmem:[%s169 + $0x18] sm:$0xff]
        %v180 = vld [vmem:[%s169 + $0x20] sm:$0xff]
        %v181 = vld [vmem:[%s169 + $0x28] sm:$0xff]
        %v182 = vld [vmem:[%s169 + $0x30] sm:$0xff]
        %v183 = vld [vmem:[%s169 + $0x38] sm:$0xff]
        %v184 = vld [vmem:[%s174] sm:$0xf]
        %vm185 = vcmask 31744
        %v187 = vsel %vm185, %v176, 0
        %v190 = vsel %vm185, %v177, 0
        %v193 = vsel %vm185, %v178, 0
        %v196 = vsel %vm185, %v179, 0
        %v199 = vsel %vm185, %v180, 0
        %v202 = vsel %vm185, %v181, 0
        %v205 = vsel %vm185, %v182, 0
        %v208 = vsel %vm185, %v183, 0
        %vm210 = vcmask 1043456
        %v212 = vsel %vm210, %v184, 0
        %214 = vmatprep.subr.mxu0 0.0
        %215 = vmatpush1.msra.mxu0 %v212
        %216 = vmatprep.subr.mxu0 0.0
        %217 = vmatpush1.msra.mxu0 0.0
        %218 = vmatprep.subr.mxu0 0.0
        %219 = vmatpush1.msra.mxu0 0.0
        %220 = vmatprep.subr.mxu0 0.0
        %221 = vmatpush1.msra.mxu0 0.0
        %222 = vmatprep.subr.mxu0 0.0
        %223 = vmatpush1.msra.mxu0 0.0
        %224 = vmatprep.subr.mxu0 0.0
        %225 = vmatpush1.msra.mxu0 0.0
        %226 = vmatprep.subr.mxu0 0.0
        %227 = vmatpush1.msra.mxu0 0.0
        %228 = vmatprep.subr.mxu0 0.0
        %229 = vmatpush1.msra.mxu0 0.0
        %230 = vmatprep.subr.mxu0 0.0
        %231 = vmatpush1.msra.mxu0 0.0
        %232 = vmatprep.subr.mxu0 0.0
        %233 = vmatpush1.msra.mxu0 0.0
        %234 = vmatprep.subr.mxu0 0.0
        %235 = vmatpush1.msra.mxu0 0.0
        %236 = vmatprep.subr.mxu0 0.0
        %237 = vmatpush1.msra.mxu0 0.0
        %238 = vmatprep.subr.mxu0 0.0
        %239 = vmatpush1.msra.mxu0 0.0
        %240 = vmatprep.subr.mxu0 0.0
        %241 = vmatpush1.msra.mxu0 0.0
        %242 = vmatprep.subr.mxu0 0.0
        %243 = vmatpush1.msra.mxu0 0.0
        %244 = vmatprep.subr.mxu0 0.0
        %245 = vmatpush1.msra.mxu0 0.0
        %246 = vmatprep.subr.mxu0 0.0
        %247 = vmatpush1.msra.mxu0 0.0
        %248 = vmatprep.subr.mxu0 0.0
        %249 = vmatpush1.msra.mxu0 0.0
        %250 = vmatprep.subr.mxu0 0.0
        %251 = vmatpush1.msra.mxu0 0.0
        %252 = vmatprep.subr.mxu0 0.0
        %253 = vmatpush1.msra.mxu0 0.0
        %254 = vmatprep.subr.mxu0 0.0
        %255 = vmatpush1.msra.mxu0 0.0
        %256 = vmatprep.subr.mxu0 0.0
        %257 = vmatpush1.msra.mxu0 0.0
        %258 = vmatprep.subr.mxu0 0.0
        %259 = vmatpush1.msra.mxu0 0.0
        %260 = vmatprep.subr.mxu0 0.0
        %261 = vmatpush1.msra.mxu0 0.0
        %262 = vmatprep.subr.mxu0 0.0
        %263 = vmatpush1.msra.mxu0 0.0
        %264 = vmatprep.subr.mxu0 0.0
        %265 = vmatpush1.msra.mxu0 0.0
        %266 = vmatprep.subr.mxu0 0.0
        %267 = vmatpush1.msra.mxu0 0.0
        %268 = vmatprep.subr.mxu0 0.0
        %269 = vmatpush1.msra.mxu0 0.0
        %270 = vmatprep.subr.mxu0 0.0
        %271 = vmatpush1.msra.mxu0 0.0
        %272 = vmatprep.subr.mxu0 0.0
        %273 = vmatpush1.msra.mxu0 0.0
        %274 = vmatprep.subr.mxu0 0.0
        %275 = vmatpush1.msra.mxu0 0.0
        %276 = vmatprep.subr.mxu0 0.0
        %277 = vmatpush1.msra.mxu0 0.0
        %278 = vmatprep.mubr.f32.mxu0 0.0
        %279 = vmatmul.mubr.f32.gmra.mrb[0].mxu0 %v187
        %v280 = vpop.f32.mrb[0].mxu0
        %v281 = vadd.f32 0.0, %v280
        %v282 = vpop.f32.mrb[0].mxu0
        %283 = vmatprep.mubr.f32.mxu0 0.0
        %284 = vmatmul.mubr.f32.gmra.mrb[0].mxu0 %v190
        %v285 = vpop.f32.mrb[0].mxu0
        %v286 = vadd.f32 0.0, %v285
        %v287 = vpop.f32.mrb[0].mxu0
        %288 = vmatprep.mubr.f32.mxu0 0.0
        %289 = vmatmul.mubr.f32.gmra.mrb[0].mxu0 %v193
        %v290 = vpop.f32.mrb[0].mxu0
        %v291 = vadd.f32 0.0, %v290
        %v292 = vpop.f32.mrb[0].mxu0
        %293 = vmatprep.mubr.f32.mxu0 0.0
        %294 = vmatmul.mubr.f32.gmra.mrb[0].mxu0 %v196
        %v295 = vpop.f32.mrb[0].mxu0
        %v296 = vadd.f32 0.0, %v295
        %v297 = vpop.f32.mrb[0].mxu0
        %298 = vmatprep.mubr.f32.mxu0 0.0
        %299 = vmatmul.mubr.f32.gmra.mrb[0].mxu0 %v199
        %v300 = vpop.f32.mrb[0].mxu0
        %v301 = vadd.f32 0.0, %v300
        %v302 = vpop.f32.mrb[0].mxu0
        %303 = vmatprep.mubr.f32.mxu0 0.0
        %304 = vmatmul.mubr.f32.gmra.mrb[0].mxu0 %v202
        %v305 = vpop.f32.mrb[0].mxu0
        %v306 = vadd.f32 0.0, %v305
        %v307 = vpop.f32.mrb[0].mxu0
        %308 = vmatprep.mubr.f32.mxu0 0.0
        %309 = vmatmul.mubr.f32.gmra.mrb[0].mxu0 %v205
        %v310 = vpop.f32.mrb[0].mxu0
        %v311 = vadd.f32 0.0, %v310
        %v312 = vpop.f32.mrb[0].mxu0
        %313 = vmatprep.mubr.f32.mxu0 0.0
        %314 = vmatmul.mubr.f32.gmra.mrb[0].mxu0 %v208
        %v315 = vpop.f32.mrb[0].mxu0
        %v316 = vadd.f32 0.0, %v315
        %v317 = vpop.f32.mrb[0].mxu0
        %318 = vdwg.mxu0
        %v319 = vand.u32 2147483647, %v281
        %vm320 = vcmp.le.f32.partialorder %v319, 0.7853982
        %vm321 = vcmp.lt.s32.totalorder %v281, 0
        %v322 = vand.u32 %v281, 2139095040
        %v323 = vshrl.u32 %v322, 23
        %v324 = vsub.s32 %v323, 127
        %v325 = vand.u32 2147483647, %v281
        %v326 = vand.u32 %v325, 8388607
        %v327 = vor.u32 %v326, 8388608
        %v328 = vsub.s32 0, %v327
        %v329 = vadd.s32 %v324, 1
        %vm330 = vcmp.gt.s32.totalorder %v329, 0
        %v331 = vsel %vm330, %v329, 0
        %v332 = vshrl.u32 %v331, 5
        %v333 = vand.u32 %v331, 31
        %v334 = vsub.s32 32, %v333
        %v335 = vshrl.u32 683565275, %v334
        %v336 = vshll.u32 683565275, %v333
        %v337 = vshrl.u32 2475754826, %v334
        %v338 = vor.u32 %v336, %v337
        %v339 = vshll.u32 2475754826, %v333
        %v340 = vshrl.u32 2131351028, %v334
        %v341 = vor.u32 %v339, %v340
        %v342 = vshll.u32 2131351028, %v333
        %v343 = vshrl.u32 2102212464, %v334
        %v344 = vor.u32 %v342, %v343
        %v345 = vshll.u32 2102212464, %v333
        %v346 = vshrl.u32 920167782, %v334
        %v347 = vor.u32 %v345, %v346
        %v348 = vshll.u32 920167782, %v333
        %v349 = vshrl.u32 1326507024, %v334
        %v350 = vor.u32 %v348, %v349
        %vm351 = vcmp.lt.s32.totalorder %v332, 1
        %vm352 = vcmp.lt.s32.totalorder %v332, 2
        %vm353 = vcmp.lt.s32.totalorder %v332, 3
        %vm354 = vcmp.lt.s32.totalorder %v332, 4
        %v355 = vsel %vm351, %v335, %v338
        %v356 = vsel %vm354, %v344, 2102212464
        %v357 = vsel %vm353, %v341, %v356
        %v358 = vsel %vm352, %v355, %v357
        %v359 = vsel %vm351, %v338, %v341
        %v360 = vsel %vm354, %v347, 920167782
        %v361 = vsel %vm353, %v344, %v360
        %v362 = vsel %vm352, %v359, %v361
        %v363 = vsel %vm351, %v341, %v344
        %v364 = vsel %vm354, %v350, 1326507024
        %v365 = vsel %vm353, %v347, %v364
        %v366 = vsel %vm352, %v363, %v365
        %v367 = vshll.u32 %v327, 8
        %v368 = vmul.u32.u64.compose %v367, %v366
        %v369 = vextract.low.u32 %v368
        %v370 = vextract.high.u32 %v368
        %v371 = vmul.u32.u64.compose %v367, %v362
        %v372 = vextract.low.u32 %v371
        %v373 = vextract.high.u32 %v371
        %v374 = vmul.u32 %v367, %v358
        %v375 = vadd.s32 %v370, %v372
        %vm376 = vc.u32 %v370, %v372
        %v377 = vadd.s32 %v373, 1
        %v378 = vsel %vm376, %v377, %v373
        %v379 = vadd.s32 %v374, %v378
        %v380 = vadd.s32 %v379, 536870912
        %v381 = vshrl.u32 %v380, 30
        %v382 = vshll.u32 %v381, 30
        %v383 = vsub.s32 %v379, %v382
        %vm384 = vcmp.lt.s32.totalorder %v383, 0
        %v385 = vsub.s32 0, %v383
        %v386 = vsel %vm384, %v385, %v383
        %v387 = vclz %v386
        %v388 = vsub.s32 %v387, 2
        %vm389 = vcmp.gt.s32.totalorder 0, %v388
        %v390 = vsel %vm389, 0, %v388
        %v391 = vsub.s32 32, %v390
        %v392 = vshll.u32 %v383, %v390
        %v393 = vshrl.u32 %v375, %v391
        %v394 = vor.u32 %v392, %v393
        %v395 = vsub.s32 4294967266, %v390
        %v396 = vadd.s32 %v395, 127
        %v397 = vshll.u32 %v396, 23
        %v398 = vor.u32 4788187, %v397
        %v399 = vand.u32 2147483647, %v398
        %v401 = vcvt.s32.f32 %v394
        %v402 = vmul.f32 %v401, %v399
        %v403 = vxor.u32 %v402, 2147483648
        %v404 = vsel %vm321, %v403, %v402
        %v405 = vsub.s32 4, %v381
        %v406 = vsel %vm321, %v405, %v381
        %v407 = vsel %vm320, %v281, %v404
        %v408 = vsel %vm320, 0, %v406
        %v409 = vcosq.f32.pop %v407
        %v410 = vsinq.f32.pop %v407
        %vm411 = vweird.f32 %v281
        %v412 = vadd.s32 %v408, 3
        %v413 = vand.u32 %v412, 3
        %vm414 = vcmp.lt.s32.totalorder %v413, 2
        %vm415 = vcmp.eq.s32.totalorder %v413, 0
        %v416 = vxor.u32 %v410, 2147483648
        %v417 = vsel %vm415, %v409, %v416
        %vm418 = vcmp.eq.s32.totalorder %v413, 2
        %v419 = vxor.u32 %v409, 2147483648
        %v420 = vsel %vm418, %v419, %v410
        %v421 = vsel %vm414, %v417, %v420
        %v422 = vsel %vm411, nan, %v421
        %v423 = vand.u32 2147483647, %v286
        %vm424 = vcmp.le.f32.partialorder %v423, 0.7853982
        %vm425 = vcmp.lt.s32.totalorder %v286, 0
        %v426 = vand.u32 %v286, 2139095040
        %v427 = vshrl.u32 %v426, 23
        %v428 = vsub.s32 %v427, 127
        %v429 = vand.u32 2147483647, %v286
        %v430 = vand.u32 %v429, 8388607
        %v431 = vor.u32 %v430, 8388608
        %v432 = vsub.s32 0, %v431
        %v433 = vadd.s32 %v428, 1
        %vm434 = vcmp.gt.s32.totalorder %v433, 0
        %v435 = vsel %vm434, %v433, 0
        %v436 = vshrl.u32 %v435, 5
        %v437 = vand.u32 %v435, 31
        %v438 = vsub.s32 32, %v437
        %v439 = vshrl.u32 683565275, %v438
        %v440 = vshll.u32 683565275, %v437
        %v441 = vshrl.u32 2475754826, %v438
        %v442 = vor.u32 %v440, %v441
        %v443 = vshll.u32 2475754826, %v437
        %v444 = vshrl.u32 2131351028, %v438
        %v445 = vor.u32 %v443, %v444
        %v446 = vshll.u32 2131351028, %v437
        %v447 = vshrl.u32 2102212464, %v438
        %v448 = vor.u32 %v446, %v447
        %v449 = vshll.u32 2102212464, %v437
        %v450 = vshrl.u32 920167782, %v438
        %v451 = vor.u32 %v449, %v450
        %v452 = vshll.u32 920167782, %v437
        %v453 = vshrl.u32 1326507024, %v438
        %v454 = vor.u32 %v452, %v453
        %vm455 = vcmp.lt.s32.totalorder %v436, 1
        %vm456 = vcmp.lt.s32.totalorder %v436, 2
        %vm457 = vcmp.lt.s32.totalorder %v436, 3
        %vm458 = vcmp.lt.s32.totalorder %v436, 4
        %v459 = vsel %vm455, %v439, %v442
        %v460 = vsel %vm458, %v448, 2102212464
        %v461 = vsel %vm457, %v445, %v460
        %v462 = vsel %vm456, %v459, %v461
        %v463 = vsel %vm455, %v442, %v445
        %v464 = vsel %vm458, %v451, 920167782
        %v465 = vsel %vm457, %v448, %v464
        %v466 = vsel %vm456, %v463, %v465
        %v467 = vsel %vm455, %v445, %v448
        %v468 = vsel %vm458, %v454, 1326507024
        %v469 = vsel %vm457, %v451, %v468
        %v470 = vsel %vm456, %v467, %v469
        %v471 = vshll.u32 %v431, 8
        %v472 = vmul.u32.u64.compose %v471, %v470
        %v473 = vextract.low.u32 %v472
        %v474 = vextract.high.u32 %v472
        %v475 = vmul.u32.u64.compose %v471, %v466
        %v476 = vextract.low.u32 %v475
        %v477 = vextract.high.u32 %v475
        %v478 = vmul.u32 %v471, %v462
        %v479 = vadd.s32 %v474, %v476
        %vm480 = vc.u32 %v474, %v476
        %v481 = vadd.s32 %v477, 1
        %v482 = vsel %vm480, %v481, %v477
        %v483 = vadd.s32 %v478, %v482
        %v484 = vadd.s32 %v483, 536870912
        %v485 = vshrl.u32 %v484, 30
        %v486 = vshll.u32 %v485, 30
        %v487 = vsub.s32 %v483, %v486
        %vm488 = vcmp.lt.s32.totalorder %v487, 0
        %v489 = vsub.s32 0, %v487
        %v490 = vsel %vm488, %v489, %v487
        %v491 = vclz %v490
        %v492 = vsub.s32 %v491, 2
        %vm493 = vcmp.gt.s32.totalorder 0, %v492
        %v494 = vsel %vm493, 0, %v492
        %v495 = vsub.s32 32, %v494
        %v496 = vshll.u32 %v487, %v494
        %v497 = vshrl.u32 %v479, %v495
        %v498 = vor.u32 %v496, %v497
        %v499 = vsub.s32 4294967266, %v494
        %v500 = vadd.s32 %v499, 127
        %v501 = vshll.u32 %v500, 23
        %v502 = vor.u32 4788187, %v501
        %v503 = vand.u32 2147483647, %v502
        %v505 = vcvt.s32.f32 %v498
        %v506 = vmul.f32 %v505, %v503
        %v507 = vxor.u32 %v506, 2147483648
        %v508 = vsel %vm425, %v507, %v506
        %v509 = vsub.s32 4, %v485
        %v510 = vsel %vm425, %v509, %v485
        %v511 = vsel %vm424, %v286, %v508
        %v512 = vsel %vm424, 0, %v510
        %v513 = vcosq.f32.pop %v511
        %v514 = vsinq.f32.pop %v511
        %vm515 = vweird.f32 %v286
        %v516 = vadd.s32 %v512, 3
        %v517 = vand.u32 %v516, 3
        %vm518 = vcmp.lt.s32.totalorder %v517, 2
        %vm519 = vcmp.eq.s32.totalorder %v517, 0
        %v520 = vxor.u32 %v514, 2147483648
        %v521 = vsel %vm519, %v513, %v520
        %vm522 = vcmp.eq.s32.totalorder %v517, 2
        %v523 = vxor.u32 %v513, 2147483648
        %v524 = vsel %vm522, %v523, %v514
        %v525 = vsel %vm518, %v521, %v524
        %v526 = vsel %vm515, nan, %v525
        %v527 = vand.u32 2147483647, %v291
        %vm528 = vcmp.le.f32.partialorder %v527, 0.7853982
        %vm529 = vcmp.lt.s32.totalorder %v291, 0
        %v530 = vand.u32 %v291, 2139095040
        %v531 = vshrl.u32 %v530, 23
        %v532 = vsub.s32 %v531, 127
        %v533 = vand.u32 2147483647, %v291
        %v534 = vand.u32 %v533, 8388607
        %v535 = vor.u32 %v534, 8388608
        %v536 = vsub.s32 0, %v535
        %v537 = vadd.s32 %v532, 1
        %vm538 = vcmp.gt.s32.totalorder %v537, 0
        %v539 = vsel %vm538, %v537, 0
        %v540 = vshrl.u32 %v539, 5
        %v541 = vand.u32 %v539, 31
        %v542 = vsub.s32 32, %v541
        %v543 = vshrl.u32 683565275, %v542
        %v544 = vshll.u32 683565275, %v541
        %v545 = vshrl.u32 2475754826, %v542
        %v546 = vor.u32 %v544, %v545
        %v547 = vshll.u32 2475754826, %v541
        %v548 = vshrl.u32 2131351028, %v542
        %v549 = vor.u32 %v547, %v548
        %v550 = vshll.u32 2131351028, %v541
        %v551 = vshrl.u32 2102212464, %v542
        %v552 = vor.u32 %v550, %v551
        %v553 = vshll.u32 2102212464, %v541
        %v554 = vshrl.u32 920167782, %v542
        %v555 = vor.u32 %v553, %v554
        %v556 = vshll.u32 920167782, %v541
        %v557 = vshrl.u32 1326507024, %v542
        %v558 = vor.u32 %v556, %v557
        %vm559 = vcmp.lt.s32.totalorder %v540, 1
        %vm560 = vcmp.lt.s32.totalorder %v540, 2
        %vm561 = vcmp.lt.s32.totalorder %v540, 3
        %vm562 = vcmp.lt.s32.totalorder %v540, 4
        %v563 = vsel %vm559, %v543, %v546
        %v564 = vsel %vm562, %v552, 2102212464
        %v565 = vsel %vm561, %v549, %v564
        %v566 = vsel %vm560, %v563, %v565
        %v567 = vsel %vm559, %v546, %v549
        %v568 = vsel %vm562, %v555, 920167782
        %v569 = vsel %vm561, %v552, %v568
        %v570 = vsel %vm560, %v567, %v569
        %v571 = vsel %vm559, %v549, %v552
        %v572 = vsel %vm562, %v558, 1326507024
        %v573 = vsel %vm561, %v555, %v572
        %v574 = vsel %vm560, %v571, %v573
        %v575 = vshll.u32 %v535, 8
        %v576 = vmul.u32.u64.compose %v575, %v574
        %v577 = vextract.low.u32 %v576
        %v578 = vextract.high.u32 %v576
        %v579 = vmul.u32.u64.compose %v575, %v570
        %v580 = vextract.low.u32 %v579
        %v581 = vextract.high.u32 %v579
        %v582 = vmul.u32 %v575, %v566
        %v583 = vadd.s32 %v578, %v580
        %vm584 = vc.u32 %v578, %v580
        %v585 = vadd.s32 %v581, 1
        %v586 = vsel %vm584, %v585, %v581
        %v587 = vadd.s32 %v582, %v586
        %v588 = vadd.s32 %v587, 536870912
        %v589 = vshrl.u32 %v588, 30
        %v590 = vshll.u32 %v589, 30
        %v591 = vsub.s32 %v587, %v590
        %vm592 = vcmp.lt.s32.totalorder %v591, 0
        %v593 = vsub.s32 0, %v591
        %v594 = vsel %vm592, %v593, %v591
        %v595 = vclz %v594
        %v596 = vsub.s32 %v595, 2
        %vm597 = vcmp.gt.s32.totalorder 0, %v596
        %v598 = vsel %vm597, 0, %v596
        %v599 = vsub.s32 32, %v598
        %v600 = vshll.u32 %v591, %v598
        %v601 = vshrl.u32 %v583, %v599
        %v602 = vor.u32 %v600, %v601
        %v603 = vsub.s32 4294967266, %v598
        %v604 = vadd.s32 %v603, 127
        %v605 = vshll.u32 %v604, 23
        %v606 = vor.u32 4788187, %v605
        %v607 = vand.u32 2147483647, %v606
        %v609 = vcvt.s32.f32 %v602
        %v610 = vmul.f32 %v609, %v607
        %v611 = vxor.u32 %v610, 2147483648
        %v612 = vsel %vm529, %v611, %v610
        %v613 = vsub.s32 4, %v589
        %v614 = vsel %vm529, %v613, %v589
        %v615 = vsel %vm528, %v291, %v612
        %v616 = vsel %vm528, 0, %v614
        %v617 = vcosq.f32.pop %v615
        %v618 = vsinq.f32.pop %v615
        %vm619 = vweird.f32 %v291
        %v620 = vadd.s32 %v616, 3
        %v621 = vand.u32 %v620, 3
        %vm622 = vcmp.lt.s32.totalorder %v621, 2
        %vm623 = vcmp.eq.s32.totalorder %v621, 0
        %v624 = vxor.u32 %v618, 2147483648
        %v625 = vsel %vm623, %v617, %v624
        %vm626 = vcmp.eq.s32.totalorder %v621, 2
        %v627 = vxor.u32 %v617, 2147483648
        %v628 = vsel %vm626, %v627, %v618
        %v629 = vsel %vm622, %v625, %v628
        %v630 = vsel %vm619, nan, %v629
        %v631 = vand.u32 2147483647, %v296
        %vm632 = vcmp.le.f32.partialorder %v631, 0.7853982
        %vm633 = vcmp.lt.s32.totalorder %v296, 0
        %v634 = vand.u32 %v296, 2139095040
        %v635 = vshrl.u32 %v634, 23
        %v636 = vsub.s32 %v635, 127
        %v637 = vand.u32 2147483647, %v296
        %v638 = vand.u32 %v637, 8388607
        %v639 = vor.u32 %v638, 8388608
        %v640 = vsub.s32 0, %v639
        %v641 = vadd.s32 %v636, 1
        %vm642 = vcmp.gt.s32.totalorder %v641, 0
        %v643 = vsel %vm642, %v641, 0
        %v644 = vshrl.u32 %v643, 5
        %v645 = vand.u32 %v643, 31
        %v646 = vsub.s32 32, %v645
        %v647 = vshrl.u32 683565275, %v646
        %v648 = vshll.u32 683565275, %v645
        %v649 = vshrl.u32 2475754826, %v646
        %v650 = vor.u32 %v648, %v649
        %v651 = vshll.u32 2475754826, %v645
        %v652 = vshrl.u32 2131351028, %v646
        %v653 = vor.u32 %v651, %v652
        %v654 = vshll.u32 2131351028, %v645
        %v655 = vshrl.u32 2102212464, %v646
        %v656 = vor.u32 %v654, %v655
        %v657 = vshll.u32 2102212464, %v645
        %v658 = vshrl.u32 920167782, %v646
        %v659 = vor.u32 %v657, %v658
        %v660 = vshll.u32 920167782, %v645
        %v661 = vshrl.u32 1326507024, %v646
        %v662 = vor.u32 %v660, %v661
        %vm663 = vcmp.lt.s32.totalorder %v644, 1
        %vm664 = vcmp.lt.s32.totalorder %v644, 2
        %vm665 = vcmp.lt.s32.totalorder %v644, 3
        %vm666 = vcmp.lt.s32.totalorder %v644, 4
        %v667 = vsel %vm663, %v647, %v650
        %v668 = vsel %vm666, %v656, 2102212464
        %v669 = vsel %vm665, %v653, %v668
        %v670 = vsel %vm664, %v667, %v669
        %v671 = vsel %vm663, %v650, %v653
        %v672 = vsel %vm666, %v659, 920167782
        %v673 = vsel %vm665, %v656, %v672
        %v674 = vsel %vm664, %v671, %v673
        %v675 = vsel %vm663, %v653, %v656
        %v676 = vsel %vm666, %v662, 1326507024
        %v677 = vsel %vm665, %v659, %v676
        %v678 = vsel %vm664, %v675, %v677
        %v679 = vshll.u32 %v639, 8
        %v680 = vmul.u32.u64.compose %v679, %v678
        %v681 = vextract.low.u32 %v680
        %v682 = vextract.high.u32 %v680
        %v683 = vmul.u32.u64.compose %v679, %v674
        %v684 = vextract.low.u32 %v683
        %v685 = vextract.high.u32 %v683
        %v686 = vmul.u32 %v679, %v670
        %v687 = vadd.s32 %v682, %v684
        %vm688 = vc.u32 %v682, %v684
        %v689 = vadd.s32 %v685, 1
        %v690 = vsel %vm688, %v689, %v685
        %v691 = vadd.s32 %v686, %v690
        %v692 = vadd.s32 %v691, 536870912
        %v693 = vshrl.u32 %v692, 30
        %v694 = vshll.u32 %v693, 30
        %v695 = vsub.s32 %v691, %v694
        %vm696 = vcmp.lt.s32.totalorder %v695, 0
        %v697 = vsub.s32 0, %v695
        %v698 = vsel %vm696, %v697, %v695
        %v699 = vclz %v698
        %v700 = vsub.s32 %v699, 2
        %vm701 = vcmp.gt.s32.totalorder 0, %v700
        %v702 = vsel %vm701, 0, %v700
        %v703 = vsub.s32 32, %v702
        %v704 = vshll.u32 %v695, %v702
        %v705 = vshrl.u32 %v687, %v703
        %v706 = vor.u32 %v704, %v705
        %v707 = vsub.s32 4294967266, %v702
        %v708 = vadd.s32 %v707, 127
        %v709 = vshll.u32 %v708, 23
        %v710 = vor.u32 4788187, %v709
        %v711 = vand.u32 2147483647, %v710
        %v713 = vcvt.s32.f32 %v706
        %v714 = vmul.f32 %v713, %v711
        %v715 = vxor.u32 %v714, 2147483648
        %v716 = vsel %vm633, %v715, %v714
        %v717 = vsub.s32 4, %v693
        %v718 = vsel %vm633, %v717, %v693
        %v719 = vsel %vm632, %v296, %v716
        %v720 = vsel %vm632, 0, %v718
        %v721 = vcosq.f32.pop %v719
        %v722 = vsinq.f32.pop %v719
        %vm723 = vweird.f32 %v296
        %v724 = vadd.s32 %v720, 3
        %v725 = vand.u32 %v724, 3
        %vm726 = vcmp.lt.s32.totalorder %v725, 2
        %vm727 = vcmp.eq.s32.totalorder %v725, 0
        %v728 = vxor.u32 %v722, 2147483648
        %v729 = vsel %vm727, %v721, %v728
        %vm730 = vcmp.eq.s32.totalorder %v725, 2
        %v731 = vxor.u32 %v721, 2147483648
        %v732 = vsel %vm730, %v731, %v722
        %v733 = vsel %vm726, %v729, %v732
        %v734 = vsel %vm723, nan, %v733
        %v735 = vand.u32 2147483647, %v301
        %vm736 = vcmp.le.f32.partialorder %v735, 0.7853982
        %vm737 = vcmp.lt.s32.totalorder %v301, 0
        %v738 = vand.u32 %v301, 2139095040
        %v739 = vshrl.u32 %v738, 23
        %v740 = vsub.s32 %v739, 127
        %v741 = vand.u32 2147483647, %v301
        %v742 = vand.u32 %v741, 8388607
        %v743 = vor.u32 %v742, 8388608
        %v744 = vsub.s32 0, %v743
        %v745 = vadd.s32 %v740, 1
        %vm746 = vcmp.gt.s32.totalorder %v745, 0
        %v747 = vsel %vm746, %v745, 0
        %v748 = vshrl.u32 %v747, 5
        %v749 = vand.u32 %v747, 31
        %v750 = vsub.s32 32, %v749
        %v751 = vshrl.u32 683565275, %v750
        %v752 = vshll.u32 683565275, %v749
        %v753 = vshrl.u32 2475754826, %v750
        %v754 = vor.u32 %v752, %v753
        %v755 = vshll.u32 2475754826, %v749
        %v756 = vshrl.u32 2131351028, %v750
        %v757 = vor.u32 %v755, %v756
        %v758 = vshll.u32 2131351028, %v749
        %v759 = vshrl.u32 2102212464, %v750
        %v760 = vor.u32 %v758, %v759
        %v761 = vshll.u32 2102212464, %v749
        %v762 = vshrl.u32 920167782, %v750
        %v763 = vor.u32 %v761, %v762
        %v764 = vshll.u32 920167782, %v749
        %v765 = vshrl.u32 1326507024, %v750
        %v766 = vor.u32 %v764, %v765
        %vm767 = vcmp.lt.s32.totalorder %v748, 1
        %vm768 = vcmp.lt.s32.totalorder %v748, 2
        %vm769 = vcmp.lt.s32.totalorder %v748, 3
        %vm770 = vcmp.lt.s32.totalorder %v748, 4
        %v771 = vsel %vm767, %v751, %v754
        %v772 = vsel %vm770, %v760, 2102212464
        %v773 = vsel %vm769, %v757, %v772
        %v774 = vsel %vm768, %v771, %v773
        %v775 = vsel %vm767, %v754, %v757
        %v776 = vsel %vm770, %v763, 920167782
        %v777 = vsel %vm769, %v760, %v776
        %v778 = vsel %vm768, %v775, %v777
        %v779 = vsel %vm767, %v757, %v760
        %v780 = vsel %vm770, %v766, 1326507024
        %v781 = vsel %vm769, %v763, %v780
        %v782 = vsel %vm768, %v779, %v781
        %v783 = vshll.u32 %v743, 8
        %v784 = vmul.u32.u64.compose %v783, %v782
        %v785 = vextract.low.u32 %v784
        %v786 = vextract.high.u32 %v784
        %v787 = vmul.u32.u64.compose %v783, %v778
        %v788 = vextract.low.u32 %v787
        %v789 = vextract.high.u32 %v787
        %v790 = vmul.u32 %v783, %v774
        %v791 = vadd.s32 %v786, %v788
        %vm792 = vc.u32 %v786, %v788
        %v793 = vadd.s32 %v789, 1
        %v794 = vsel %vm792, %v793, %v789
        %v795 = vadd.s32 %v790, %v794
        %v796 = vadd.s32 %v795, 536870912
        %v797 = vshrl.u32 %v796, 30
        %v798 = vshll.u32 %v797, 30
        %v799 = vsub.s32 %v795, %v798
        %vm800 = vcmp.lt.s32.totalorder %v799, 0
        %v801 = vsub.s32 0, %v799
        %v802 = vsel %vm800, %v801, %v799
        %v803 = vclz %v802
        %v804 = vsub.s32 %v803, 2
        %vm805 = vcmp.gt.s32.totalorder 0, %v804
        %v806 = vsel %vm805, 0, %v804
        %v807 = vsub.s32 32, %v806
        %v808 = vshll.u32 %v799, %v806
        %v809 = vshrl.u32 %v791, %v807
        %v810 = vor.u32 %v808, %v809
        %v811 = vsub.s32 4294967266, %v806
        %v812 = vadd.s32 %v811, 127
        %v813 = vshll.u32 %v812, 23
        %v814 = vor.u32 4788187, %v813
        %v815 = vand.u32 2147483647, %v814
        %v817 = vcvt.s32.f32 %v810
        %v818 = vmul.f32 %v817, %v815
        %v819 = vxor.u32 %v818, 2147483648
        %v820 = vsel %vm737, %v819, %v818
        %v821 = vsub.s32 4, %v797
        %v822 = vsel %vm737, %v821, %v797
        %v823 = vsel %vm736, %v301, %v820
        %v824 = vsel %vm736, 0, %v822
        %v825 = vcosq.f32.pop %v823
        %v826 = vsinq.f32.pop %v823
        %vm827 = vweird.f32 %v301
        %v828 = vadd.s32 %v824, 3
        %v829 = vand.u32 %v828, 3
        %vm830 = vcmp.lt.s32.totalorder %v829, 2
        %vm831 = vcmp.eq.s32.totalorder %v829, 0
        %v832 = vxor.u32 %v826, 2147483648
        %v833 = vsel %vm831, %v825, %v832
        %vm834 = vcmp.eq.s32.totalorder %v829, 2
        %v835 = vxor.u32 %v825, 2147483648
        %v836 = vsel %vm834, %v835, %v826
        %v837 = vsel %vm830, %v833, %v836
        %v838 = vsel %vm827, nan, %v837
        %v839 = vand.u32 2147483647, %v306
        %vm840 = vcmp.le.f32.partialorder %v839, 0.7853982
        %vm841 = vcmp.lt.s32.totalorder %v306, 0
        %v842 = vand.u32 %v306, 2139095040
        %v843 = vshrl.u32 %v842, 23
        %v844 = vsub.s32 %v843, 127
        %v845 = vand.u32 2147483647, %v306
        %v846 = vand.u32 %v845, 8388607
        %v847 = vor.u32 %v846, 8388608
        %v848 = vsub.s32 0, %v847
        %v849 = vadd.s32 %v844, 1
        %vm850 = vcmp.gt.s32.totalorder %v849, 0
        %v851 = vsel %vm850, %v849, 0
        %v852 = vshrl.u32 %v851, 5
        %v853 = vand.u32 %v851, 31
        %v854 = vsub.s32 32, %v853
        %v855 = vshrl.u32 683565275, %v854
        %v856 = vshll.u32 683565275, %v853
        %v857 = vshrl.u32 2475754826, %v854
        %v858 = vor.u32 %v856, %v857
        %v859 = vshll.u32 2475754826, %v853
        %v860 = vshrl.u32 2131351028, %v854
        %v861 = vor.u32 %v859, %v860
        %v862 = vshll.u32 2131351028, %v853
        %v863 = vshrl.u32 2102212464, %v854
        %v864 = vor.u32 %v862, %v863
        %v865 = vshll.u32 2102212464, %v853
        %v866 = vshrl.u32 920167782, %v854
        %v867 = vor.u32 %v865, %v866
        %v868 = vshll.u32 920167782, %v853
        %v869 = vshrl.u32 1326507024, %v854
        %v870 = vor.u32 %v868, %v869
        %vm871 = vcmp.lt.s32.totalorder %v852, 1
        %vm872 = vcmp.lt.s32.totalorder %v852, 2
        %vm873 = vcmp.lt.s32.totalorder %v852, 3
        %vm874 = vcmp.lt.s32.totalorder %v852, 4
        %v875 = vsel %vm871, %v855, %v858
        %v876 = vsel %vm874, %v864, 2102212464
        %v877 = vsel %vm873, %v861, %v876
        %v878 = vsel %vm872, %v875, %v877
        %v879 = vsel %vm871, %v858, %v861
        %v880 = vsel %vm874, %v867, 920167782
        %v881 = vsel %vm873, %v864, %v880
        %v882 = vsel %vm872, %v879, %v881
        %v883 = vsel %vm871, %v861, %v864
        %v884 = vsel %vm874, %v870, 1326507024
        %v885 = vsel %vm873, %v867, %v884
        %v886 = vsel %vm872, %v883, %v885
        %v887 = vshll.u32 %v847, 8
        %v888 = vmul.u32.u64.compose %v887, %v886
        %v889 = vextract.low.u32 %v888
        %v890 = vextract.high.u32 %v888
        %v891 = vmul.u32.u64.compose %v887, %v882
        %v892 = vextract.low.u32 %v891
        %v893 = vextract.high.u32 %v891
        %v894 = vmul.u32 %v887, %v878
        %v895 = vadd.s32 %v890, %v892
        %vm896 = vc.u32 %v890, %v892
        %v897 = vadd.s32 %v893, 1
        %v898 = vsel %vm896, %v897, %v893
        %v899 = vadd.s32 %v894, %v898
        %v900 = vadd.s32 %v899, 536870912
        %v901 = vshrl.u32 %v900, 30
        %v902 = vshll.u32 %v901, 30
        %v903 = vsub.s32 %v899, %v902
        %vm904 = vcmp.lt.s32.totalorder %v903, 0
        %v905 = vsub.s32 0, %v903
        %v906 = vsel %vm904, %v905, %v903
        %v907 = vclz %v906
        %v908 = vsub.s32 %v907, 2
        %vm909 = vcmp.gt.s32.totalorder 0, %v908
        %v910 = vsel %vm909, 0, %v908
        %v911 = vsub.s32 32, %v910
        %v912 = vshll.u32 %v903, %v910
        %v913 = vshrl.u32 %v895, %v911
        %v914 = vor.u32 %v912, %v913
        %v915 = vsub.s32 4294967266, %v910
        %v916 = vadd.s32 %v915, 127
        %v917 = vshll.u32 %v916, 23
        %v918 = vor.u32 4788187, %v917
        %v919 = vand.u32 2147483647, %v918
        %v921 = vcvt.s32.f32 %v914
        %v922 = vmul.f32 %v921, %v919
        %v923 = vxor.u32 %v922, 2147483648
        %v924 = vsel %vm841, %v923, %v922
        %v925 = vsub.s32 4, %v901
        %v926 = vsel %vm841, %v925, %v901
        %v927 = vsel %vm840, %v306, %v924
        %v928 = vsel %vm840, 0, %v926
        %v929 = vcosq.f32.pop %v927
        %v930 = vsinq.f32.pop %v927
        %vm931 = vweird.f32 %v306
        %v932 = vadd.s32 %v928, 3
        %v933 = vand.u32 %v932, 3
        %vm934 = vcmp.lt.s32.totalorder %v933, 2
        %vm935 = vcmp.eq.s32.totalorder %v933, 0
        %v936 = vxor.u32 %v930, 2147483648
        %v937 = vsel %vm935, %v929, %v936
        %vm938 = vcmp.eq.s32.totalorder %v933, 2
        %v939 = vxor.u32 %v929, 2147483648
        %v940 = vsel %vm938, %v939, %v930
        %v941 = vsel %vm934, %v937, %v940
        %v942 = vsel %vm931, nan, %v941
        %v943 = vand.u32 2147483647, %v311
        %vm944 = vcmp.le.f32.partialorder %v943, 0.7853982
        %vm945 = vcmp.lt.s32.totalorder %v311, 0
        %v946 = vand.u32 %v311, 2139095040
        %v947 = vshrl.u32 %v946, 23
        %v948 = vsub.s32 %v947, 127
        %v949 = vand.u32 2147483647, %v311
        %v950 = vand.u32 %v949, 8388607
        %v951 = vor.u32 %v950, 8388608
        %v952 = vsub.s32 0, %v951
        %v953 = vadd.s32 %v948, 1
        %vm954 = vcmp.gt.s32.totalorder %v953, 0
        %v955 = vsel %vm954, %v953, 0
        %v956 = vshrl.u32 %v955, 5
        %v957 = vand.u32 %v955, 31
        %v958 = vsub.s32 32, %v957
        %v959 = vshrl.u32 683565275, %v958
        %v960 = vshll.u32 683565275, %v957
        %v961 = vshrl.u32 2475754826, %v958
        %v962 = vor.u32 %v960, %v961
        %v963 = vshll.u32 2475754826, %v957
        %v964 = vshrl.u32 2131351028, %v958
        %v965 = vor.u32 %v963, %v964
        %v966 = vshll.u32 2131351028, %v957
        %v967 = vshrl.u32 2102212464, %v958
        %v968 = vor.u32 %v966, %v967
        %v969 = vshll.u32 2102212464, %v957
        %v970 = vshrl.u32 920167782, %v958
        %v971 = vor.u32 %v969, %v970
        %v972 = vshll.u32 920167782, %v957
        %v973 = vshrl.u32 1326507024, %v958
        %v974 = vor.u32 %v972, %v973
        %vm975 = vcmp.lt.s32.totalorder %v956, 1
        %vm976 = vcmp.lt.s32.totalorder %v956, 2
        %vm977 = vcmp.lt.s32.totalorder %v956, 3
        %vm978 = vcmp.lt.s32.totalorder %v956, 4
        %v979 = vsel %vm975, %v959, %v962
        %v980 = vsel %vm978, %v968, 2102212464
        %v981 = vsel %vm977, %v965, %v980
        %v982 = vsel %vm976, %v979, %v981
        %v983 = vsel %vm975, %v962, %v965
        %v984 = vsel %vm978, %v971, 920167782
        %v985 = vsel %vm977, %v968, %v984
        %v986 = vsel %vm976, %v983, %v985
        %v987 = vsel %vm975, %v965, %v968
        %v988 = vsel %vm978, %v974, 1326507024
        %v989 = vsel %vm977, %v971, %v988
        %v990 = vsel %vm976, %v987, %v989
        %v991 = vshll.u32 %v951, 8
        %v992 = vmul.u32.u64.compose %v991, %v990
        %v993 = vextract.low.u32 %v992
        %v994 = vextract.high.u32 %v992
        %v995 = vmul.u32.u64.compose %v991, %v986
        %v996 = vextract.low.u32 %v995
        %v997 = vextract.high.u32 %v995
        %v998 = vmul.u32 %v991, %v982
        %v999 = vadd.s32 %v994, %v996
        %vm1000 = vc.u32 %v994, %v996
        %v1001 = vadd.s32 %v997, 1
        %v1002 = vsel %vm1000, %v1001, %v997
        %v1003 = vadd.s32 %v998, %v1002
        %v1004 = vadd.s32 %v1003, 536870912
        %v1005 = vshrl.u32 %v1004, 30
        %v1006 = vshll.u32 %v1005, 30
        %v1007 = vsub.s32 %v1003, %v1006
        %vm1008 = vcmp.lt.s32.totalorder %v1007, 0
        %v1009 = vsub.s32 0, %v1007
        %v1010 = vsel %vm1008, %v1009, %v1007
        %v1011 = vclz %v1010
        %v1012 = vsub.s32 %v1011, 2
        %vm1013 = vcmp.gt.s32.totalorder 0, %v1012
        %v1014 = vsel %vm1013, 0, %v1012
        %v1015 = vsub.s32 32, %v1014
        %v1016 = vshll.u32 %v1007, %v1014
        %v1017 = vshrl.u32 %v999, %v1015
        %v1018 = vor.u32 %v1016, %v1017
        %v1019 = vsub.s32 4294967266, %v1014
        %v1020 = vadd.s32 %v1019, 127
        %v1021 = vshll.u32 %v1020, 23
        %v1022 = vor.u32 4788187, %v1021
        %v1023 = vand.u32 2147483647, %v1022
        %v1025 = vcvt.s32.f32 %v1018
        %v1026 = vmul.f32 %v1025, %v1023
        %v1027 = vxor.u32 %v1026, 2147483648
        %v1028 = vsel %vm945, %v1027, %v1026
        %v1029 = vsub.s32 4, %v1005
        %v1030 = vsel %vm945, %v1029, %v1005
        %v1031 = vsel %vm944, %v311, %v1028
        %v1032 = vsel %vm944, 0, %v1030
        %v1033 = vcosq.f32.pop %v1031
        %v1034 = vsinq.f32.pop %v1031
        %vm1035 = vweird.f32 %v311
        %v1036 = vadd.s32 %v1032, 3
        %v1037 = vand.u32 %v1036, 3
        %vm1038 = vcmp.lt.s32.totalorder %v1037, 2
        %vm1039 = vcmp.eq.s32.totalorder %v1037, 0
        %v1040 = vxor.u32 %v1034, 2147483648
        %v1041 = vsel %vm1039, %v1033, %v1040
        %vm1042 = vcmp.eq.s32.totalorder %v1037, 2
        %v1043 = vxor.u32 %v1033, 2147483648
        %v1044 = vsel %vm1042, %v1043, %v1034
        %v1045 = vsel %vm1038, %v1041, %v1044
        %v1046 = vsel %vm1035, nan, %v1045
        %v1047 = vand.u32 2147483647, %v316
        %vm1048 = vcmp.le.f32.partialorder %v1047, 0.7853982
        %vm1049 = vcmp.lt.s32.totalorder %v316, 0
        %v1050 = vand.u32 %v316, 2139095040
        %v1051 = vshrl.u32 %v1050, 23
        %v1052 = vsub.s32 %v1051, 127
        %v1053 = vand.u32 2147483647, %v316
        %v1054 = vand.u32 %v1053, 8388607
        %v1055 = vor.u32 %v1054, 8388608
        %v1056 = vsub.s32 0, %v1055
        %v1057 = vadd.s32 %v1052, 1
        %vm1058 = vcmp.gt.s32.totalorder %v1057, 0
        %v1059 = vsel %vm1058, %v1057, 0
        %v1060 = vshrl.u32 %v1059, 5
        %v1061 = vand.u32 %v1059, 31
        %v1062 = vsub.s32 32, %v1061
        %v1063 = vshrl.u32 683565275, %v1062
        %v1064 = vshll.u32 683565275, %v1061
        %v1065 = vshrl.u32 2475754826, %v1062
        %v1066 = vor.u32 %v1064, %v1065
        %v1067 = vshll.u32 2475754826, %v1061
        %v1068 = vshrl.u32 2131351028, %v1062
        %v1069 = vor.u32 %v1067, %v1068
        %v1070 = vshll.u32 2131351028, %v1061
        %v1071 = vshrl.u32 2102212464, %v1062
        %v1072 = vor.u32 %v1070, %v1071
        %v1073 = vshll.u32 2102212464, %v1061
        %v1074 = vshrl.u32 920167782, %v1062
        %v1075 = vor.u32 %v1073, %v1074
        %v1076 = vshll.u32 920167782, %v1061
        %v1077 = vshrl.u32 1326507024, %v1062
        %v1078 = vor.u32 %v1076, %v1077
        %vm1079 = vcmp.lt.s32.totalorder %v1060, 1
        %vm1080 = vcmp.lt.s32.totalorder %v1060, 2
        %vm1081 = vcmp.lt.s32.totalorder %v1060, 3
        %vm1082 = vcmp.lt.s32.totalorder %v1060, 4
        %v1083 = vsel %vm1079, %v1063, %v1066
        %v1084 = vsel %vm1082, %v1072, 2102212464
        %v1085 = vsel %vm1081, %v1069, %v1084
        %v1086 = vsel %vm1080, %v1083, %v1085
        %v1087 = vsel %vm1079, %v1066, %v1069
        %v1088 = vsel %vm1082, %v1075, 920167782
        %v1089 = vsel %vm1081, %v1072, %v1088
        %v1090 = vsel %vm1080, %v1087, %v1089
        %v1091 = vsel %vm1079, %v1069, %v1072
        %v1092 = vsel %vm1082, %v1078, 1326507024
        %v1093 = vsel %vm1081, %v1075, %v1092
        %v1094 = vsel %vm1080, %v1091, %v1093
        %v1095 = vshll.u32 %v1055, 8
        %v1096 = vmul.u32.u64.compose %v1095, %v1094
        %v1097 = vextract.low.u32 %v1096
        %v1098 = vextract.high.u32 %v1096
        %v1099 = vmul.u32.u64.compose %v1095, %v1090
        %v1100 = vextract.low.u32 %v1099
        %v1101 = vextract.high.u32 %v1099
        %v1102 = vmul.u32 %v1095, %v1086
        %v1103 = vadd.s32 %v1098, %v1100
        %vm1104 = vc.u32 %v1098, %v1100
        %v1105 = vadd.s32 %v1101, 1
        %v1106 = vsel %vm1104, %v1105, %v1101
        %v1107 = vadd.s32 %v1102, %v1106
        %v1108 = vadd.s32 %v1107, 536870912
        %v1109 = vshrl.u32 %v1108, 30
        %v1110 = vshll.u32 %v1109, 30
        %v1111 = vsub.s32 %v1107, %v1110
        %vm1112 = vcmp.lt.s32.totalorder %v1111, 0
        %v1113 = vsub.s32 0, %v1111
        %v1114 = vsel %vm1112, %v1113, %v1111
        %v1115 = vclz %v1114
        %v1116 = vsub.s32 %v1115, 2
        %vm1117 = vcmp.gt.s32.totalorder 0, %v1116
        %v1118 = vsel %vm1117, 0, %v1116
        %v1119 = vsub.s32 32, %v1118
        %v1120 = vshll.u32 %v1111, %v1118
        %v1121 = vshrl.u32 %v1103, %v1119
        %v1122 = vor.u32 %v1120, %v1121
        %v1123 = vsub.s32 4294967266, %v1118
        %v1124 = vadd.s32 %v1123, 127
        %v1125 = vshll.u32 %v1124, 23
        %v1126 = vor.u32 4788187, %v1125
        %v1127 = vand.u32 2147483647, %v1126
        %v1129 = vcvt.s32.f32 %v1122
        %v1130 = vmul.f32 %v1129, %v1127
        %v1131 = vxor.u32 %v1130, 2147483648
        %v1132 = vsel %vm1049, %v1131, %v1130
        %v1133 = vsub.s32 4, %v1109
        %v1134 = vsel %vm1049, %v1133, %v1109
        %v1135 = vsel %vm1048, %v316, %v1132
        %v1136 = vsel %vm1048, 0, %v1134
        %v1137 = vcosq.f32.pop %v1135
        %v1138 = vsinq.f32.pop %v1135
        %vm1139 = vweird.f32 %v316
        %v1140 = vadd.s32 %v1136, 3
        %v1141 = vand.u32 %v1140, 3
        %vm1142 = vcmp.lt.s32.totalorder %v1141, 2
        %vm1143 = vcmp.eq.s32.totalorder %v1141, 0
        %v1144 = vxor.u32 %v1138, 2147483648
        %v1145 = vsel %vm1143, %v1137, %v1144
        %vm1146 = vcmp.eq.s32.totalorder %v1141, 2
        %v1147 = vxor.u32 %v1137, 2147483648
        %v1148 = vsel %vm1146, %v1147, %v1138
        %v1149 = vsel %vm1142, %v1145, %v1148
        %v1150 = vsel %vm1139, nan, %v1149
        %1151 = vst [vmem:[%s164] sm:$0xff] %v422
        %1152 = vst [vmem:[%s164 + $0x8] sm:$0xff] %v526
        %1153 = vst [vmem:[%s164 + $0x10] sm:$0xff] %v630
        %1154 = vst [vmem:[%s164 + $0x18] sm:$0xff] %v734
        %1155 = vst [vmem:[%s164 + $0x20] sm:$0xff] %v838
        %1156 = vst [vmem:[%s164 + $0x28] sm:$0xff] %v942
        %1157 = vst [vmem:[%s164 + $0x30] sm:$0xff] %v1046
        %1158 = vst [vmem:[%s164 + $0x38] sm:$0xff] %v1150
        %s1159 = sand.u32 %s90, 1
        %s1160 = scalar_lea.sflag [#allocation3], %s1159
        %s1161 = sand.u32 %s90, 1
        %s1162 = smul.addr %s1161, 64
        %s1163 = scalar_lea.vmem [#allocation2], %s1162
        // Predicated region
        $region29: #{tpu_custom_call.1} parent=27 // pred_check
          %p1164 = pneg %p100
        $region30: #{tpu_custom_call.1} parent=27 // pred_check_branch
          %1166 = sbr.rel (%p1164) target = $region32
        $region31: #{tpu_custom_call.1} parent=27 // pred_region
          %s1167 = smul.u32 8, %s20
          %s1169 = ssub.s32 1024, 1024
          %1170 = vsyncadd %s1160, %s1169
          %s1171 = sadd.s32 %s21, %s1167
          %s1172 = smul.addr %s1171, 128
          %s1173 = scalar_lea.hbm %s2, %s1172
          %s1174 = sshll.u32 %s1163, 4
          %s1175 = int_to_ptr.vmem [resolvable:$true] %s1174
          %1180 = dma.vmem_to_hbm [thread:$0]  %s1175, 1024, %s1173, %s1160, 128, 128, 8
        $region32: #{tpu_custom_call.1} parent=27 // pred_fallthru
          _
      $region28: #{tpu_custom_call.1} parent=5 // pred_fallthru
        _
      %p1181 = scmp.le.s32.totalorder 2, %s11
      // Predicated region
      $region33: #{tpu_custom_call.1} parent=5 // pred_check
        %p1182 = pneg %p1181
      $region34: #{tpu_custom_call.1} parent=5 // pred_check_branch
        %1184 = sbr.rel (%p1182) target = $region36
      $region35: #{tpu_custom_call.1} parent=5 // pred_region
        %s1185 = ssub.s32 %s11, 2
        // Predicated region
        $region37: #{tpu_custom_call.1} parent=35 // pred_check
          %p1186 = pneg %p106
        $region38: #{tpu_custom_call.1} parent=35 // pred_check_branch
          %1188 = sbr.rel (%p1186) target = $region40
        $region39: #{tpu_custom_call.1} parent=35 // pred_region
          %s1189 = sand.u32 %s91, 1
          %s1190 = scalar_lea.sflag [#allocation3], %s1189
          %s1191 = sand.u32 %s91, 1
          %s1192 = smul.addr %s1191, 64
          %s1193 = scalar_lea.vmem [#allocation2], %s1192
          %1194 = dma.done %s1190, 1024
        $region40: #{tpu_custom_call.1} parent=35 // pred_fallthru
          _
      $region36: #{tpu_custom_call.1} parent=5 // pred_fallthru
        _
    $region6: #{tpu_custom_call.1} parent=1 // loop_footer
      %s15 = sadd.s32 1, %s11
    $region7: #{tpu_custom_call.1} parent=1 // loop_footer_branch
      %10 = sbr.rel target = $region3
    $region8: #{tpu_custom_call.1} parent=1 // loop_exit
      _
    %1195 = vsyncpa [#allocation3], 1
    %s1196 = scalar_lea.sflag [#allocation3], 1
    %1197 = vsyncpa %s1196, 1

</llo_original>
